<compile_context>
chip_gen: v5e
topology: v5e:2x2
jax: 0.10.0
libtpu: 0.0.40
codegen_flags: <defaults>
</compile_context>

<pallas_src>
import functools

import jax
import jax.numpy as jnp
from jax.experimental import pallas as pl
from jax.experimental.pallas import tpu as pltpu


def _round_up(x, m):
    return (x + m - 1) // m * m


# ----------------------------- kernels --------------------------------------


def _ffn_kernel_acc(x_ref, w1_ref, b1_ref, w2_ref, b2_ref, o_ref, acc_ref):
    """Multi hidden-tile variant; grid = (token tiles, hidden tiles)."""
    h_idx = pl.program_id(1)

    @pl.when(h_idx == 0)
    def _init():
        acc_ref[...] = jnp.zeros_like(acc_ref)

    # Cast x to the MXU dtype in-kernel (VPU cast hides under the MXU, and the
    # f32 x tile is only read once from HBM).
    x = x_ref[...].astype(w1_ref.dtype)
    h = jnp.dot(x, w1_ref[...], preferred_element_type=jnp.float32)
    h = jnp.maximum(h + b1_ref[...].astype(jnp.float32), 0.0)

    # Down-projection partial sum for this hidden tile (bf16 feed, f32 acc).
    acc_ref[...] += jnp.dot(h.astype(w2_ref.dtype), w2_ref[...],
                            preferred_element_type=jnp.float32)

    @pl.when(h_idx == pl.num_programs(1) - 1)
    def _finalize():
        o_ref[...] = (acc_ref[...]
                      + b2_ref[...].astype(jnp.float32)).astype(o_ref.dtype)


def _ffn_kernel_single(x_ref, w1_ref, b1_ref, w2_ref, b2_ref, o_ref):
    """Single hidden-tile variant: no accumulator scratch, no pl.when."""
    x = x_ref[...].astype(w1_ref.dtype)
    h = jnp.dot(x, w1_ref[...], preferred_element_type=jnp.float32)
    h = jnp.maximum(h + b1_ref[...].astype(jnp.float32), 0.0)
    y = jnp.dot(h.astype(w2_ref.dtype), w2_ref[...],
                preferred_element_type=jnp.float32)
    o_ref[...] = (y + b2_ref[...].astype(jnp.float32)).astype(o_ref.dtype)


# --------------------------- host-side helpers -------------------------------


def _device_kind():
    try:
        return jax.devices()[0].device_kind.lower()
    except Exception:
        return ""


def _vmem_capacity_bytes():
    try:
        return int(pltpu.get_tpu_info().vmem_capacity_bytes)
    except Exception:
        kind = _device_kind()
        if ("v5" in kind) or ("v6" in kind):
            return 128 * 1024 * 1024
        return 64 * 1024 * 1024          # conservative (v7x / unknown)


def _pick_tile(size, pref, align, min_tiles=1):
    """Largest tile <= pref (multiple of align) that divides the padded size
    with bounded padding waste; best-effort >= min_tiles tiles."""
    size_al = _round_up(size, align)
    pref = max(align, (min(pref, size_al) // align) * align)
    cand = pref
    while cand >= align:
        padded = _round_up(size, cand)
        waste = padded - size
        ntiles = padded // cand
        if ((ntiles >= min_tiles or cand == align)
                and waste <= max(align, padded // 16)):
            return cand, padded
        cand -= align
    return align, size_al


# ------------------------------- wrapper -------------------------------------


@functools.partial(jax.jit, static_argnames=("tm", "th"))
def feed_forward(x, w1, b1, w2, b2, *, tm=None, th=None):
    """x: [B, T, C] -> [B, T, C].  w1:[C,H] b1:[1,H] w2:[H,C] b2:[1,C]."""
    B, T, C = x.shape
    H = w1.shape[1]
    M = B * T

    compute_dtype = w1.dtype                    # bf16 recommended (MXU feed)
    out_dtype = x.dtype
    x2d = x.reshape(M, C)                       # keep dtype; cast in-kernel

    kind = _device_kind()
    is_v7 = ("v7" in kind) or ("7x" in kind)
    if tm is None:
        tm = 1024 if "v6" in kind else 512      # roofline-driven default
    if th is None:
        th = 1024

    x_bytes = jnp.dtype(x2d.dtype).itemsize
    w_bytes = jnp.dtype(compute_dtype).itemsize
    out_bytes = jnp.dtype(out_dtype).itemsize

    vmem_cap = int(_vmem_capacity_bytes() * 0.8)   # headroom for Mosaic scratch

    def vmem_estimate(tm_, th_, multi_h):
        e = 2 * tm_ * C * x_bytes                  # x tile (double-buffered)
        e += 2 * (C * th_ + th_) * w_bytes         # W1 + b1 tiles
        e += 2 * (th_ * C + C) * w_bytes           # W2 + b2 tiles
        e += 2 * tm_ * C * out_bytes               # output tile
        e += tm_ * th_ * (4 + w_bytes)             # f32 h + bf16 copy of h
        if multi_h:
            e += tm_ * C * 4                       # f32 accumulator scratch
        return e

    # Pick tiles; shrink preferences until the corrected VMEM budget fits.
    min_m_tiles = 2 if is_v7 else 1                # feed both v7x TensorCores
    tm_pref, th_pref = tm, th
    while True:
        tm_eff, M_pad = _pick_tile(M, tm_pref, 8, min_tiles=min_m_tiles)
        if H >= 128:
            th_eff, H_pad = _pick_tile(H, th_pref, 128)
        else:
            th_eff = H_pad = _round_up(H, 8)
        multi_h = (H_pad // th_eff) > 1
        budget = int(vmem_estimate(tm_eff, th_eff, multi_h) * 1.25) + (1 << 20)
        if budget <= vmem_cap or (tm_pref <= 128 and th_pref <= 512):
            break
        if th_pref > 512:
            th_pref //= 2
        else:
            tm_pref //= 2

    # Zero-padding is exact: padded hidden units give relu(0 + 0) = 0 and the
    # corresponding zero rows of W2 contribute nothing; padded token rows are
    # sliced off below.
    if M_pad != M:
        x2d = jnp.pad(x2d, ((0, M_pad - M), (0, 0)))
    if H_pad != H:
        w1 = jnp.pad(w1, ((0, 0), (0, H_pad - H)))
        b1 = jnp.pad(b1, ((0, 0), (0, H_pad - H)))
        w2 = jnp.pad(w2, ((0, H_pad - H), (0, 0)))

    grid_m = M_pad // tm_eff
    grid_h = H_pad // th_eff

    vmem_limit = min(max(budget, 32 * 1024 * 1024), vmem_cap)

    # Advisory cost estimate: weights are re-streamed once per token tile.
    cost = pl.CostEstimate(
        flops=4 * M_pad * C * H_pad,
        transcendentals=0,
        bytes_accessed=int(
            M_pad * C * x_bytes
            + grid_m * (C * H_pad + H_pad + H_pad * C + C) * w_bytes
            + M_pad * C * out_bytes))

    if grid_h == 1:
        grid_spec = pltpu.PrefetchScalarGridSpec(
            num_scalar_prefetch=0,
            grid=(grid_m,),
            in_specs=[
                pl.BlockSpec((tm_eff, C), lambda i: (i, 0)),     # x tile
                pl.BlockSpec((C, H_pad), lambda i: (0, 0)),      # W1 (resident)
                pl.BlockSpec((1, H_pad), lambda i: (0, 0)),      # b1 (resident)
                pl.BlockSpec((H_pad, C), lambda i: (0, 0)),      # W2 (resident)
                pl.BlockSpec((1, C), lambda i: (0, 0)),          # b2 (resident)
            ],
            out_specs=pl.BlockSpec((tm_eff, C), lambda i: (i, 0)),
        )
        kernel = _ffn_kernel_single
        dim_sem = ("parallel",)
    else:
        grid_spec = pltpu.PrefetchScalarGridSpec(
            num_scalar_prefetch=0,
            grid=(grid_m, grid_h),
            in_specs=[
                pl.BlockSpec((tm_eff, C), lambda i, h: (i, 0)),  # x (resident over h)
                pl.BlockSpec((C, th_eff), lambda i, h: (0, h)),  # W1 tile
                pl.BlockSpec((1, th_eff), lambda i, h: (0, h)),  # b1 tile
                pl.BlockSpec((th_eff, C), lambda i, h: (h, 0)),  # W2 tile
                pl.BlockSpec((1, C), lambda i, h: (0, 0)),       # b2 (resident)
            ],
            out_specs=pl.BlockSpec((tm_eff, C), lambda i, h: (i, 0)),
            scratch_shapes=[pltpu.VMEM((tm_eff, C), jnp.float32)],
        )
        kernel = _ffn_kernel_acc
        dim_sem = ("parallel", "arbitrary")

    out2d = pl.pallas_call(
        kernel,
        out_shape=jax.ShapeDtypeStruct((M_pad, C), out_dtype),
        grid_spec=grid_spec,
        compiler_params=pltpu.CompilerParams(
            dimension_semantics=dim_sem,
            vmem_limit_bytes=vmem_limit),
        cost_estimate=cost,
    )(x2d, w1, b1, w2, b2)

    return out2d[:M].reshape(B, T, C)


def init_params(key, n_embd, dtype=jnp.bfloat16):
    """Deterministic torch-Linear-style init (uniform +/- 1/sqrt(fan_in))."""
    hidden = 4 * n_embd
    k1, k2, k3, k4 = jax.random.split(key, 4)
    bound1 = 1.0 / float(jnp.sqrt(jnp.float32(n_embd)))
    bound2 = 1.0 / float(jnp.sqrt(jnp.float32(hidden)))
    w1 = jax.random.uniform(k1, (n_embd, hidden), jnp.float32, -bound1, bound1)
    b1 = jax.random.uniform(k2, (1, hidden), jnp.float32, -bound1, bound1)
    w2 = jax.random.uniform(k3, (hidden, n_embd), jnp.float32, -bound2, bound2)
    b2 = jax.random.uniform(k4, (1, n_embd), jnp.float32, -bound2, bound2)
    return (w1.astype(dtype), b1.astype(dtype), w2.astype(dtype), b2.astype(dtype))


if __name__ == "__main__":
    key = jax.random.PRNGKey(0)
    kx, kp = jax.random.split(key)

    # Small but lane-dense shapes: C = 128 (multiple of 128), hidden = 512.
    B, T, n_embd = 2, 16, 128
    dropout = 0.0                    # inference-mode dropout == identity

    x = jax.random.normal(kx, (B, T, n_embd), jnp.float32)
    w1, b1, w2, b2 = init_params(kp, n_embd, dtype=jnp.bfloat16)

    out = feed_forward(x, w1, b1, w2, b2)
    out = jax.block_until_ready(out)

    # Reference in plain JAX (f32 math on the same bf16-quantized x / params).
    xf = x.astype(jnp.bfloat16).astype(jnp.float32)
    w1f, b1f = w1.astype(jnp.float32), b1.astype(jnp.float32)
    w2f, b2f = w2.astype(jnp.float32), b2.astype(jnp.float32)
    ref = jnp.maximum(xf @ w1f + b1f[0], 0.0) @ w2f + b2f[0]

    assert out.shape == (B, T, n_embd)
    assert jnp.allclose(out, ref, atol=2e-2, rtol=2e-2), "mismatch vs reference"

    # Also exercise the multi-hidden-tile (accumulator) path with a forced
    # small hidden tile, to cover both kernel variants.
    out2 = jax.block_until_ready(feed_forward(x, w1, b1, w2, b2, th=128))
    assert jnp.allclose(out2, ref, atol=2e-2, rtol=2e-2), "mismatch (multi-tile)"

    print("KERNEL_OK")
</pallas_src>

<mosaic_0001>
module attributes {stable_mosaic.version = 11 : i64} {
  func.func @_ffn_kernel_single(%arg0: i32, %arg1: memref<32x128xf32, #tpu.memory_space<vmem>>, %arg2: memref<128x512xbf16, #tpu.memory_space<vmem>>, %arg3: memref<1x512xbf16, #tpu.memory_space<vmem>>, %arg4: memref<512x128xbf16, #tpu.memory_space<vmem>>, %arg5: memref<1x128xbf16, #tpu.memory_space<vmem>>, %arg6: memref<32x128xf32, #tpu.memory_space<vmem>>) attributes {dimension_semantics = [#tpu.dimension_semantics<parallel>], iteration_bounds = array<i64: 1>, scalar_prefetch = 0 : i64, scratch_operands = 0 : i64, tpu.core_type = #tpu.core_type<tc>, window_params = [{transform_indices = @transform_0, window_bounds = array<i64: 32, 128>}, {pipeline_mode = #tpu.pipeline_mode<synchronous>, transform_indices = @transform_1, window_bounds = array<i64: 128, 512>}, {pipeline_mode = #tpu.pipeline_mode<synchronous>, transform_indices = @transform_2, window_bounds = array<i64: 1, 512>}, {pipeline_mode = #tpu.pipeline_mode<synchronous>, transform_indices = @transform_3, window_bounds = array<i64: 512, 128>}, {pipeline_mode = #tpu.pipeline_mode<synchronous>, transform_indices = @transform_4, window_bounds = array<i64: 1, 128>}, {transform_indices = @transform_5, window_bounds = array<i64: 32, 128>}]} {
    %c0 = arith.constant 0 : index
    %c0_0 = arith.constant 0 : index
    %0 = vector.load %arg1[%c0, %c0_0] : memref<32x128xf32, #tpu.memory_space<vmem>>, vector<32x128xf32>
    %1 = arith.truncf %0 : vector<32x128xf32> to vector<32x128xbf16>
    %c0_1 = arith.constant 0 : index
    %c0_2 = arith.constant 0 : index
    %2 = vector.load %arg2[%c0_1, %c0_2] : memref<128x512xbf16, #tpu.memory_space<vmem>>, vector<128x512xbf16>
    %cst = arith.constant dense<0.000000e+00> : vector<32x512xf32>
    %3 = tpu.matmul %1, %2, %cst {dimension_numbers = #tpu.dot_dimension_numbers<[1], [0], [0], [1], [0, 0, 1, 1], [], []>} : vector<32x128xbf16>, vector<128x512xbf16>, vector<32x512xf32> -> vector<32x512xf32>
    %c0_3 = arith.constant 0 : index
    %c0_4 = arith.constant 0 : index
    %4 = vector.load %arg3[%c0_3, %c0_4] : memref<1x512xbf16, #tpu.memory_space<vmem>>, vector<1x512xbf16>
    %5 = arith.extf %4 : vector<1x512xbf16> to vector<1x512xf32>
    %6 = vector.broadcast %5 : vector<1x512xf32> to vector<32x512xf32>
    %7 = arith.addf %3, %6 : vector<32x512xf32>
    %cst_5 = arith.constant 0.000000e+00 : f32
    %8 = vector.broadcast %cst_5 : f32 to vector<32x512xf32>
    %9 = arith.maximumf %7, %8 : vector<32x512xf32>
    %10 = arith.truncf %9 : vector<32x512xf32> to vector<32x512xbf16>
    %c0_6 = arith.constant 0 : index
    %c0_7 = arith.constant 0 : index
    %11 = vector.load %arg4[%c0_6, %c0_7] : memref<512x128xbf16, #tpu.memory_space<vmem>>, vector<512x128xbf16>
    %cst_8 = arith.constant dense<0.000000e+00> : vector<32x128xf32>
    %12 = tpu.matmul %10, %11, %cst_8 {dimension_numbers = #tpu.dot_dimension_numbers<[1], [0], [0], [1], [0, 0, 1, 1], [], []>} : vector<32x512xbf16>, vector<512x128xbf16>, vector<32x128xf32> -> vector<32x128xf32>
    %c0_9 = arith.constant 0 : index
    %c0_10 = arith.constant 0 : index
    %13 = vector.load %arg5[%c0_9, %c0_10] : memref<1x128xbf16, #tpu.memory_space<vmem>>, vector<1x128xbf16>
    %14 = arith.extf %13 : vector<1x128xbf16> to vector<1x128xf32>
    %15 = vector.broadcast %14 : vector<1x128xf32> to vector<32x128xf32>
    %16 = arith.addf %12, %15 : vector<32x128xf32>
    %c0_11 = arith.constant 0 : index
    %c0_12 = arith.constant 0 : index
    %17 = vector.load %arg6[%c0_11, %c0_12] : memref<32x128xf32, #tpu.memory_space<vmem>>, vector<32x128xf32>
    tpu.vector_store %arg6[%c0_11, %c0_12], %16 {strides = array<i32>} : memref<32x128xf32, #tpu.memory_space<vmem>>, vector<32x128xf32>,
    return
  }
  func.func @transform_0(%arg0: i32) -> (i32, i32) {
    %c0_i32 = arith.constant 0 : i32
    %c0_i32_0 = arith.constant 0 : i32
    return %arg0, %c0_i32 : i32, i32
  }
  func.func @transform_1(%arg0: i32) -> (i32, i32) {
    %c0_i32 = arith.constant 0 : i32
    %c0_i32_0 = arith.constant 0 : i32
    %c0_i32_1 = arith.constant 0 : i32
    return %c0_i32, %c0_i32_0 : i32, i32
  }
  func.func @transform_2(%arg0: i32) -> (i32, i32) {
    %c0_i32 = arith.constant 0 : i32
    %c0_i32_0 = arith.constant 0 : i32
    %c0_i32_1 = arith.constant 0 : i32
    return %c0_i32, %c0_i32_0 : i32, i32
  }
  func.func @transform_3(%arg0: i32) -> (i32, i32) {
    %c0_i32 = arith.constant 0 : i32
    %c0_i32_0 = arith.constant 0 : i32
    %c0_i32_1 = arith.constant 0 : i32
    return %c0_i32, %c0_i32_0 : i32, i32
  }
  func.func @transform_4(%arg0: i32) -> (i32, i32) {
    %c0_i32 = arith.constant 0 : i32
    %c0_i32_0 = arith.constant 0 : i32
    %c0_i32_1 = arith.constant 0 : i32
    return %c0_i32, %c0_i32_0 : i32, i32
  }
  func.func @transform_5(%arg0: i32) -> (i32, i32) {
    %c0_i32 = arith.constant 0 : i32
    %c0_i32_0 = arith.constant 0 : i32
    return %arg0, %c0_i32 : i32, i32
  }
}

</mosaic_0001>

<llo_original>
// kernel: feed_forward.1
$region0: #{feed_forward.1}
  #allocation0 [shape = 'u32[]', space=smem, size = 0x4, offset = 0x4, fixed_abs, tag = 'smem constant byte address 0x4 - core index']
  #allocation1 [shape = 'u32[72,128]{1,0:T(1,128)}', space=vmem, size = 0x9000, scoped, tag = 'internal scratch']
  %s0 = inlined_call_operand.hbm [shape: f32[32,128], index: 0, kind: input, shape index: {}]
  %s1 = inlined_call_operand.hbm [shape: bf16[128,512], index: 1, kind: input, shape index: {}]
  %s2 = inlined_call_operand.hbm [shape: bf16[1,512], index: 2, kind: input, shape index: {}]
  %s3 = inlined_call_operand.hbm [shape: bf16[512,128], index: 3, kind: input, shape index: {}]
  %s4 = inlined_call_operand.vmem [shape: bf16[1,128], index: 4, kind: input, shape index: {}]
  %s5 = inlined_call_operand.hbm [shape: f32[32,128], index: 5, kind: output, shape index: {}]
  %s6 = sld [smem:[#allocation0]]
  $region46: #{feed_forward.1} parent=0
    _
  %s8 = ssub.s32 1, %s6
  %s9 = scalar_select 0, %s8, %s6
  $region1: #{feed_forward.1} parent=0
    #allocation2 [shape = 'u8[16384]{0}', space=vmem, size = 0x4000, scoped, tag = 'input window, operand 0, single buffered']
    #allocation3 [shape = 's32[1]{0}', space=sflag, size = 0x4, scoped, tag = 'scoped memory for feed_forward.1']
    #allocation4 [shape = 's32[1]{0}', space=sflag, size = 0x4, scoped, tag = 'scoped memory for feed_forward.1']
    #allocation5 [shape = 'u8[131072]{0}', space=vmem, size = 0x20000, scoped, tag = 'input window, operand 1, single buffered']
    #allocation6 [shape = 's32[1]{0}', space=sflag, size = 0x4, scoped, tag = 'scoped memory for feed_forward.1']
    #allocation7 [shape = 'u8[2048]{0}', space=vmem, size = 0x800, scoped, tag = 'input window, operand 2, single buffered']
    #allocation8 [shape = 'u8[131072]{0}', space=vmem, size = 0x20000, scoped, tag = 'input window, operand 3, single buffered']
    #allocation9 [shape = 's32[1]{0}', space=sflag, size = 0x4, scoped, tag = 'scoped memory for feed_forward.1']
    #allocation10 [shape = 'u8[16384]{0}', space=vmem, size = 0x4000, scoped, tag = 'output window, operand 0, single buffered']
    %10 = vsyncpa [#allocation3], 0
    %11 = vsyncpa [#allocation6], 0
    %12 = vsyncpa [#allocation9], 0
    %13 = vsyncpa [#allocation4], 0
    // Predicated region
    $region2: #{feed_forward.1} parent=1 // pred_check
      _
    $region3: #{feed_forward.1} parent=1 // pred_check_branch
      %15 = sbr.rel (0) target = $region5
    $region4: #{feed_forward.1} parent=1 // pred_region
      %17 = vsyncadd [#allocation3], 0
      %s18 = sshll.u32 %s0, 4
      %s19 = int_to_ptr.hbm [resolvable:$true] %s18
      %s20 = sshll.u32 [#allocation2], 4
      %s21 = int_to_ptr.vmem [resolvable:$true] %s20
      %26 = dma.hbm_to_vmem [thread:$0]  %s19, 512, %s21, [#allocation3], 128, 128, 8
    $region5: #{feed_forward.1} parent=1 // pred_fallthru
      _
    // Predicated region
    $region6: #{feed_forward.1} parent=1 // pred_check
      _
    $region7: #{feed_forward.1} parent=1 // pred_check_branch
      %28 = sbr.rel (0) target = $region9
    $region8: #{feed_forward.1} parent=1 // pred_region
      %30 = vsyncadd [#allocation6], 0
      %s31 = sshll.u32 %s1, 4
      %s32 = int_to_ptr.hbm [resolvable:$true] %s31
      %s33 = sshll.u32 [#allocation5], 4
      %s34 = int_to_ptr.vmem [resolvable:$true] %s33
      %39 = dma.hbm_to_vmem [thread:$0]  %s32, 4096, %s34, [#allocation6], 256, 256, 16
    $region9: #{feed_forward.1} parent=1 // pred_fallthru
      _
    // Predicated region
    $region10: #{feed_forward.1} parent=1 // pred_check
      _
    $region11: #{feed_forward.1} parent=1 // pred_check_branch
      %41 = sbr.rel (0) target = $region13
    $region12: #{feed_forward.1} parent=1 // pred_region
      %43 = vsyncadd [#allocation6], 0
      %s45 = sshll.u32 %s2, 4
      %s46 = int_to_ptr.hbm [resolvable:$true] %s45
      %s47 = sshll.u32 [#allocation7], 4
      %s48 = int_to_ptr.vmem [resolvable:$true] %s47
      %50 = dma.hbm_to_vmem [thread:$0]  %s46, 64, %s48, [#allocation6]
    $region13: #{feed_forward.1} parent=1 // pred_fallthru
      _
    // Predicated region
    $region14: #{feed_forward.1} parent=1 // pred_check
      _
    $region15: #{feed_forward.1} parent=1 // pred_check_branch
      %52 = sbr.rel (0) target = $region17
    $region16: #{feed_forward.1} parent=1 // pred_region
      %54 = vsyncadd [#allocation9], 0
      %s55 = sshll.u32 %s3, 4
      %s56 = int_to_ptr.hbm [resolvable:$true] %s55
      %s57 = sshll.u32 [#allocation8], 4
      %s58 = int_to_ptr.vmem [resolvable:$true] %s57
      %63 = dma.hbm_to_vmem [thread:$0]  %s56, 4096, %s58, [#allocation9], 64, 64, 4
    $region17: #{feed_forward.1} parent=1 // pred_fallthru
      _
    // Predicated region
    $region18: #{feed_forward.1} parent=1 // pred_check
      _
    $region19: #{feed_forward.1} parent=1 // pred_check_branch
      %65 = sbr.rel (0) target = $region21
    $region20: #{feed_forward.1} parent=1 // pred_region
      _
    $region21: #{feed_forward.1} parent=1 // pred_fallthru
      _
    // Predicated region
    $region22: #{feed_forward.1} parent=1 // pred_check
      _
    $region23: #{feed_forward.1} parent=1 // pred_check_branch
      %67 = sbr.rel (0) target = $region25
    $region24: #{feed_forward.1} parent=1 // pred_region
      %69 = dma.done [#allocation3], 512
    $region25: #{feed_forward.1} parent=1 // pred_fallthru
      _
    // Predicated region
    $region26: #{feed_forward.1} parent=1 // pred_check
      _
    $region27: #{feed_forward.1} parent=1 // pred_check_branch
      %71 = sbr.rel (0) target = $region29
    $region28: #{feed_forward.1} parent=1 // pred_region
      %73 = dma.done [#allocation6], 4096
    $region29: #{feed_forward.1} parent=1 // pred_fallthru
      _
    // Predicated region
    $region30: #{feed_forward.1} parent=1 // pred_check
      _
    $region31: #{feed_forward.1} parent=1 // pred_check_branch
      %75 = sbr.rel (0) target = $region33
    $region32: #{feed_forward.1} parent=1 // pred_region
      %77 = dma.done [#allocation6], 64
    $region33: #{feed_forward.1} parent=1 // pred_fallthru
      _
    // Predicated region
    $region34: #{feed_forward.1} parent=1 // pred_check
      _
    $region35: #{feed_forward.1} parent=1 // pred_check_branch
      %79 = sbr.rel (0) target = $region37
    $region36: #{feed_forward.1} parent=1 // pred_region
      %81 = dma.done [#allocation9], 4096
    $region37: #{feed_forward.1} parent=1 // pred_fallthru
      _
    %v82 = vld [vmem:[#allocation2] sm:$0xff]
    %v83 = vld [vmem:[#allocation2 + $0x8] sm:$0xff]
    %v84 = vld [vmem:[#allocation2 + $0x10] sm:$0xff]
    %v85 = vld [vmem:[#allocation2 + $0x18] sm:$0xff]
    %v86 = vpack.c.bf16 %v83, %v82
    %v87 = vpack.c.bf16 %v85, %v84
    %v88 = vld [vmem:[#allocation5] sm:$0xff]
    %v89 = vld [vmem:[#allocation5 + $0x8] sm:$0xff]
    %v90 = vld [vmem:[#allocation5 + $0x10] sm:$0xff]
    %v91 = vld [vmem:[#allocation5 + $0x18] sm:$0xff]
    %v92 = vld [vmem:[#allocation5 + $0x20] sm:$0xff]
    %v93 = vld [vmem:[#allocation5 + $0x28] sm:$0xff]
    %v94 = vld [vmem:[#allocation5 + $0x30] sm:$0xff]
    %v95 = vld [vmem:[#allocation5 + $0x38] sm:$0xff]
    %v96 = vld [vmem:[#allocation5 + $0x40] sm:$0xff]
    %v97 = vld [vmem:[#allocation5 + $0x48] sm:$0xff]
    %v98 = vld [vmem:[#allocation5 + $0x50] sm:$0xff]
    %v99 = vld [vmem:[#allocation5 + $0x58] sm:$0xff]
    %v100 = vld [vmem:[#allocation5 + $0x60] sm:$0xff]
    %v101 = vld [vmem:[#allocation5 + $0x68] sm:$0xff]
    %v102 = vld [vmem:[#allocation5 + $0x70] sm:$0xff]
    %v103 = vld [vmem:[#allocation5 + $0x78] sm:$0xff]
    %v104 = vld [vmem:[#allocation5 + $0x80] sm:$0xff]
    %v105 = vld [vmem:[#allocation5 + $0x88] sm:$0xff]
    %v106 = vld [vmem:[#allocation5 + $0x90] sm:$0xff]
    %v107 = vld [vmem:[#allocation5 + $0x98] sm:$0xff]
    %v108 = vld [vmem:[#allocation5 + $0xa0] sm:$0xff]
    %v109 = vld [vmem:[#allocation5 + $0xa8] sm:$0xff]
    %v110 = vld [vmem:[#allocation5 + $0xb0] sm:$0xff]
    %v111 = vld [vmem:[#allocation5 + $0xb8] sm:$0xff]
    %v112 = vld [vmem:[#allocation5 + $0xc0] sm:$0xff]
    %v113 = vld [vmem:[#allocation5 + $0xc8] sm:$0xff]
    %v114 = vld [vmem:[#allocation5 + $0xd0] sm:$0xff]
    %v115 = vld [vmem:[#allocation5 + $0xd8] sm:$0xff]
    %v116 = vld [vmem:[#allocation5 + $0xe0] sm:$0xff]
    %v117 = vld [vmem:[#allocation5 + $0xe8] sm:$0xff]
    %v118 = vld [vmem:[#allocation5 + $0xf0] sm:$0xff]
    %v119 = vld [vmem:[#allocation5 + $0xf8] sm:$0xff]
    %v120 = vld [vmem:[#allocation7] sm:$0xf]
    %v121 = vunpack.c.l.bf16 %v120
    %v123 = vperm.slane %v121, 0
    %v124 = vperm.slane %v121, 2
    %v125 = vperm.slane %v121, 4
    %v126 = vperm.slane %v121, 6
    %v131 = vperm.slane %v123, 0
    %v132 = vperm.slane %v124, 0
    %v133 = vperm.slane %v125, 0
    %v134 = vperm.slane %v126, 0
    %v167 = vunpack.c.l.b16 %v88
    %v168 = vunpack.c.h.b16 %v88
    %v169 = vunpack.c.l.b16 %v89
    %v170 = vunpack.c.h.b16 %v89
    %v171 = vunpack.c.l.b16 %v90
    %v172 = vunpack.c.h.b16 %v90
    %v173 = vunpack.c.l.b16 %v91
    %v174 = vunpack.c.h.b16 %v91
    %v175 = vunpack.c.l.b16 %v92
    %v176 = vunpack.c.h.b16 %v92
    %v177 = vunpack.c.l.b16 %v93
    %v178 = vunpack.c.h.b16 %v93
    %v179 = vunpack.c.l.b16 %v94
    %v180 = vunpack.c.h.b16 %v94
    %v181 = vunpack.c.l.b16 %v95
    %v182 = vunpack.c.h.b16 %v95
    %v183 = vunpack.c.l.b16 %v96
    %v184 = vunpack.c.h.b16 %v96
    %v185 = vunpack.c.l.b16 %v97
    %v186 = vunpack.c.h.b16 %v97
    %v187 = vunpack.c.l.b16 %v98
    %v188 = vunpack.c.h.b16 %v98
    %v189 = vunpack.c.l.b16 %v99
    %v190 = vunpack.c.h.b16 %v99
    %v191 = vunpack.c.l.b16 %v100
    %v192 = vunpack.c.h.b16 %v100
    %v193 = vunpack.c.l.b16 %v101
    %v194 = vunpack.c.h.b16 %v101
    %v195 = vunpack.c.l.b16 %v102
    %v196 = vunpack.c.h.b16 %v102
    %v197 = vunpack.c.l.b16 %v103
    %v198 = vunpack.c.h.b16 %v103
    %v199 = vunpack.c.l.b16 %v104
    %v200 = vunpack.c.h.b16 %v104
    %v201 = vunpack.c.l.b16 %v105
    %v202 = vunpack.c.h.b16 %v105
    %v203 = vunpack.c.l.b16 %v106
    %v204 = vunpack.c.h.b16 %v106
    %v205 = vunpack.c.l.b16 %v107
    %v206 = vunpack.c.h.b16 %v107
    %v207 = vunpack.c.l.b16 %v108
    %v208 = vunpack.c.h.b16 %v108
    %v209 = vunpack.c.l.b16 %v109
    %v210 = vunpack.c.h.b16 %v109
    %v211 = vunpack.c.l.b16 %v110
    %v212 = vunpack.c.h.b16 %v110
    %v213 = vunpack.c.l.b16 %v111
    %v214 = vunpack.c.h.b16 %v111
    %v215 = vunpack.c.l.b16 %v112
    %v216 = vunpack.c.h.b16 %v112
    %v217 = vunpack.c.l.b16 %v113
    %v218 = vunpack.c.h.b16 %v113
    %v219 = vunpack.c.l.b16 %v114
    %v220 = vunpack.c.h.b16 %v114
    %v221 = vunpack.c.l.b16 %v115
    %v222 = vunpack.c.h.b16 %v115
    %v223 = vunpack.c.l.b16 %v116
    %v224 = vunpack.c.h.b16 %v116
    %v225 = vunpack.c.l.b16 %v117
    %v226 = vunpack.c.h.b16 %v117
    %v227 = vunpack.c.l.b16 %v118
    %v228 = vunpack.c.h.b16 %v118
    %v229 = vunpack.c.l.b16 %v119
    %v230 = vunpack.c.h.b16 %v119
    %v231 = vpack.c.b16 %v171, %v167
    %v232 = vpack.c.b16 %v172, %v168
    %v233 = vpack.c.b16 %v173, %v169
    %v234 = vpack.c.b16 %v174, %v170
    %v235 = vpack.c.b16 %v179, %v175
    %v236 = vpack.c.b16 %v180, %v176
    %v237 = vpack.c.b16 %v181, %v177
    %v238 = vpack.c.b16 %v182, %v178
    %v239 = vpack.c.b16 %v187, %v183
    %v240 = vpack.c.b16 %v188, %v184
    %v241 = vpack.c.b16 %v189, %v185
    %v242 = vpack.c.b16 %v190, %v186
    %v243 = vpack.c.b16 %v195, %v191
    %v244 = vpack.c.b16 %v196, %v192
    %v245 = vpack.c.b16 %v197, %v193
    %v246 = vpack.c.b16 %v198, %v194
    %v247 = vpack.c.b16 %v203, %v199
    %v248 = vpack.c.b16 %v204, %v200
    %v249 = vpack.c.b16 %v205, %v201
    %v250 = vpack.c.b16 %v206, %v202
    %v251 = vpack.c.b16 %v211, %v207
    %v252 = vpack.c.b16 %v212, %v208
    %v253 = vpack.c.b16 %v213, %v209
    %v254 = vpack.c.b16 %v214, %v210
    %v255 = vpack.c.b16 %v219, %v215
    %v256 = vpack.c.b16 %v220, %v216
    %v257 = vpack.c.b16 %v221, %v217
    %v258 = vpack.c.b16 %v222, %v218
    %v259 = vpack.c.b16 %v227, %v223
    %v260 = vpack.c.b16 %v228, %v224
    %v261 = vpack.c.b16 %v229, %v225
    %v262 = vpack.c.b16 %v230, %v226
    %295 = vmatpush.bf16.msra.mxu0 %v259
    %296 = vmatpush.bf16.msra.mxu0 %v255
    %297 = vmatpush.bf16.msra.mxu0 %v251
    %298 = vmatpush.bf16.msra.mxu0 %v247
    %299 = vmatpush.bf16.msra.mxu0 %v243
    %300 = vmatpush.bf16.msra.mxu0 %v239
    %301 = vmatpush.bf16.msra.mxu0 %v235
    %302 = vmatpush.bf16.msra.mxu0 %v231
    %303 = vmatmul.bf16.gmra.mxu0 %v86
    %v304 = vpop.f32.mrf.mxu0
    %v305 = vadd.f32 %v131, %v304
    %v306 = vpop.f32.mrf.mxu0
    %v307 = vadd.f32 %v131, %v306
    %308 = vmatmul.bf16.gmra.mxu0 %v87
    %v309 = vpop.f32.mrf.mxu0
    %v310 = vadd.f32 %v131, %v309
    %v311 = vpop.f32.mrf.mxu0
    %v312 = vadd.f32 %v131, %v311
    %313 = vdwg.mxu0
    %314 = vmatpush.bf16.msra.mxu0 %v260
    %315 = vmatpush.bf16.msra.mxu0 %v256
    %316 = vmatpush.bf16.msra.mxu0 %v252
    %317 = vmatpush.bf16.msra.mxu0 %v248
    %318 = vmatpush.bf16.msra.mxu0 %v244
    %319 = vmatpush.bf16.msra.mxu0 %v240
    %320 = vmatpush.bf16.msra.mxu0 %v236
    %321 = vmatpush.bf16.msra.mxu0 %v232
    %322 = vmatmul.bf16.gmra.mxu0 %v86
    %v323 = vpop.f32.mrf.mxu0
    %v324 = vadd.f32 %v132, %v323
    %v325 = vpop.f32.mrf.mxu0
    %v326 = vadd.f32 %v132, %v325
    %327 = vmatmul.bf16.gmra.mxu0 %v87
    %v328 = vpop.f32.mrf.mxu0
    %v329 = vadd.f32 %v132, %v328
    %v330 = vpop.f32.mrf.mxu0
    %v331 = vadd.f32 %v132, %v330
    %332 = vdwg.mxu0
    %333 = vmatpush.bf16.msra.mxu0 %v261
    %334 = vmatpush.bf16.msra.mxu0 %v257
    %335 = vmatpush.bf16.msra.mxu0 %v253
    %336 = vmatpush.bf16.msra.mxu0 %v249
    %337 = vmatpush.bf16.msra.mxu0 %v245
    %338 = vmatpush.bf16.msra.mxu0 %v241
    %339 = vmatpush.bf16.msra.mxu0 %v237
    %340 = vmatpush.bf16.msra.mxu0 %v233
    %341 = vmatmul.bf16.gmra.mxu0 %v86
    %v342 = vpop.f32.mrf.mxu0
    %v343 = vadd.f32 %v133, %v342
    %v344 = vpop.f32.mrf.mxu0
    %v345 = vadd.f32 %v133, %v344
    %346 = vmatmul.bf16.gmra.mxu0 %v87
    %v347 = vpop.f32.mrf.mxu0
    %v348 = vadd.f32 %v133, %v347
    %v349 = vpop.f32.mrf.mxu0
    %v350 = vadd.f32 %v133, %v349
    %351 = vdwg.mxu0
    %352 = vmatpush.bf16.msra.mxu0 %v262
    %353 = vmatpush.bf16.msra.mxu0 %v258
    %354 = vmatpush.bf16.msra.mxu0 %v254
    %355 = vmatpush.bf16.msra.mxu0 %v250
    %356 = vmatpush.bf16.msra.mxu0 %v246
    %357 = vmatpush.bf16.msra.mxu0 %v242
    %358 = vmatpush.bf16.msra.mxu0 %v238
    %359 = vmatpush.bf16.msra.mxu0 %v234
    %360 = vmatmul.bf16.gmra.mxu0 %v86
    %v361 = vpop.f32.mrf.mxu0
    %v362 = vadd.f32 %v134, %v361
    %v363 = vpop.f32.mrf.mxu0
    %v364 = vadd.f32 %v134, %v363
    %365 = vmatmul.bf16.gmra.mxu0 %v87
    %v366 = vpop.f32.mrf.mxu0
    %v367 = vadd.f32 %v134, %v366
    %v368 = vpop.f32.mrf.mxu0
    %v369 = vadd.f32 %v134, %v368
    %370 = vdwg.mxu0
    %v371 = vmax.f32 %v305, 0.0
    %v372 = vmax.f32 %v324, 0.0
    %v373 = vmax.f32 %v343, 0.0
    %v374 = vmax.f32 %v362, 0.0
    %v375 = vmax.f32 %v307, 0.0
    %v376 = vmax.f32 %v326, 0.0
    %v377 = vmax.f32 %v345, 0.0
    %v378 = vmax.f32 %v364, 0.0
    %v379 = vmax.f32 %v310, 0.0
    %v380 = vmax.f32 %v329, 0.0
    %v381 = vmax.f32 %v348, 0.0
    %v382 = vmax.f32 %v367, 0.0
    %v383 = vmax.f32 %v312, 0.0
    %v384 = vmax.f32 %v331, 0.0
    %v385 = vmax.f32 %v350, 0.0
    %v386 = vmax.f32 %v369, 0.0
    %v387 = vpack.c.bf16 %v375, %v371
    %v388 = vpack.c.bf16 %v376, %v372
    %v389 = vpack.c.bf16 %v377, %v373
    %v390 = vpack.c.bf16 %v378, %v374
    %v391 = vpack.c.bf16 %v383, %v379
    %v392 = vpack.c.bf16 %v384, %v380
    %v393 = vpack.c.bf16 %v385, %v381
    %v394 = vpack.c.bf16 %v386, %v382
    %v395 = vld [vmem:[#allocation8] sm:$0xf]
    %v396 = vld [vmem:[#allocation8 + $0x4] sm:$0xf]
    %v397 = vld [vmem:[#allocation8 + $0x8] sm:$0xf]
    %v398 = vld [vmem:[#allocation8 + $0xc] sm:$0xf]
    %v399 = vld [vmem:[#allocation8 + $0x10] sm:$0xf]
    %v400 = vld [vmem:[#allocation8 + $0x14] sm:$0xf]
    %v401 = vld [vmem:[#allocation8 + $0x18] sm:$0xf]
    %v402 = vld [vmem:[#allocation8 + $0x1c] sm:$0xf]
    %v403 = vld [vmem:[#allocation8 + $0x20] sm:$0xf]
    %v404 = vld [vmem:[#allocation8 + $0x24] sm:$0xf]
    %v405 = vld [vmem:[#allocation8 + $0x28] sm:$0xf]
    %v406 = vld [vmem:[#allocation8 + $0x2c] sm:$0xf]
    %v407 = vld [vmem:[#allocation8 + $0x30] sm:$0xf]
    %v408 = vld [vmem:[#allocation8 + $0x34] sm:$0xf]
    %v409 = vld [vmem:[#allocation8 + $0x38] sm:$0xf]
    %v410 = vld [vmem:[#allocation8 + $0x3c] sm:$0xf]
    %v411 = vld [vmem:[#allocation8 + $0x40] sm:$0xf]
    %v412 = vld [vmem:[#allocation8 + $0x44] sm:$0xf]
    %v413 = vld [vmem:[#allocation8 + $0x48] sm:$0xf]
    %v414 = vld [vmem:[#allocation8 + $0x4c] sm:$0xf]
    %v415 = vld [vmem:[#allocation8 + $0x50] sm:$0xf]
    %v416 = vld [vmem:[#allocation8 + $0x54] sm:$0xf]
    %v417 = vld [vmem:[#allocation8 + $0x58] sm:$0xf]
    %v418 = vld [vmem:[#allocation8 + $0x5c] sm:$0xf]
    %v419 = vld [vmem:[#allocation8 + $0x60] sm:$0xf]
    %v420 = vld [vmem:[#allocation8 + $0x64] sm:$0xf]
    %v421 = vld [vmem:[#allocation8 + $0x68] sm:$0xf]
    %v422 = vld [vmem:[#allocation8 + $0x6c] sm:$0xf]
    %v423 = vld [vmem:[#allocation8 + $0x70] sm:$0xf]
    %v424 = vld [vmem:[#allocation8 + $0x74] sm:$0xf]
    %v425 = vld [vmem:[#allocation8 + $0x78] sm:$0xf]
    %v426 = vld [vmem:[#allocation8 + $0x7c] sm:$0xf]
    %v427 = vld [vmem:[#allocation8 + $0x80] sm:$0xf]
    %v428 = vld [vmem:[#allocation8 + $0x84] sm:$0xf]
    %v429 = vld [vmem:[#allocation8 + $0x88] sm:$0xf]
    %v430 = vld [vmem:[#allocation8 + $0x8c] sm:$0xf]
    %v431 = vld [vmem:[#allocation8 + $0x90] sm:$0xf]
    %v432 = vld [vmem:[#allocation8 + $0x94] sm:$0xf]
    %v433 = vld [vmem:[#allocation8 + $0x98] sm:$0xf]
    %v434 = vld [vmem:[#allocation8 + $0x9c] sm:$0xf]
    %v435 = vld [vmem:[#allocation8 + $0xa0] sm:$0xf]
    %v436 = vld [vmem:[#allocation8 + $0xa4] sm:$0xf]
    %v437 = vld [vmem:[#allocation8 + $0xa8] sm:$0xf]
    %v438 = vld [vmem:[#allocation8 + $0xac] sm:$0xf]
    %v439 = vld [vmem:[#allocation8 + $0xb0] sm:$0xf]
    %v440 = vld [vmem:[#allocation8 + $0xb4] sm:$0xf]
    %v441 = vld [vmem:[#allocation8 + $0xb8] sm:$0xf]
    %v442 = vld [vmem:[#allocation8 + $0xbc] sm:$0xf]
    %v443 = vld [vmem:[#allocation8 + $0xc0] sm:$0xf]
    %v444 = vld [vmem:[#allocation8 + $0xc4] sm:$0xf]
    %v445 = vld [vmem:[#allocation8 + $0xc8] sm:$0xf]
    %v446 = vld [vmem:[#allocation8 + $0xcc] sm:$0xf]
    %v447 = vld [vmem:[#allocation8 + $0xd0] sm:$0xf]
    %v448 = vld [vmem:[#allocation8 + $0xd4] sm:$0xf]
    %v449 = vld [vmem:[#allocation8 + $0xd8] sm:$0xf]
    %v450 = vld [vmem:[#allocation8 + $0xdc] sm:$0xf]
    %v451 = vld [vmem:[#allocation8 + $0xe0] sm:$0xf]
    %v452 = vld [vmem:[#allocation8 + $0xe4] sm:$0xf]
    %v453 = vld [vmem:[#allocation8 + $0xe8] sm:$0xf]
    %v454 = vld [vmem:[#allocation8 + $0xec] sm:$0xf]
    %v455 = vld [vmem:[#allocation8 + $0xf0] sm:$0xf]
    %v456 = vld [vmem:[#allocation8 + $0xf4] sm:$0xf]
    %v457 = vld [vmem:[#allocation8 + $0xf8] sm:$0xf]
    %v458 = vld [vmem:[#allocation8 + $0xfc] sm:$0xf]
    %v459 = vld [vmem:[%s4] sm:$0x1]
    %v460 = vunpack.c.l.bf16 %v459
    %v461 = vperm.slane %v460, 0
    %v526 = vunpack.c.l.b16 %v395
    %v527 = vunpack.c.l.b16 %v396
    %v528 = vunpack.c.l.b16 %v397
    %v529 = vunpack.c.l.b16 %v398
    %v530 = vunpack.c.l.b16 %v399
    %v531 = vunpack.c.l.b16 %v400
    %v532 = vunpack.c.l.b16 %v401
    %v533 = vunpack.c.l.b16 %v402
    %v534 = vunpack.c.l.b16 %v403
    %v535 = vunpack.c.l.b16 %v404
    %v536 = vunpack.c.l.b16 %v405
    %v537 = vunpack.c.l.b16 %v406
    %v538 = vunpack.c.l.b16 %v407
    %v539 = vunpack.c.l.b16 %v408
    %v540 = vunpack.c.l.b16 %v409
    %v541 = vunpack.c.l.b16 %v410
    %v542 = vunpack.c.l.b16 %v411
    %v543 = vunpack.c.l.b16 %v412
    %v544 = vunpack.c.l.b16 %v413
    %v545 = vunpack.c.l.b16 %v414
    %v546 = vunpack.c.l.b16 %v415
    %v547 = vunpack.c.l.b16 %v416
    %v548 = vunpack.c.l.b16 %v417
    %v549 = vunpack.c.l.b16 %v418
    %v550 = vunpack.c.l.b16 %v419
    %v551 = vunpack.c.l.b16 %v420
    %v552 = vunpack.c.l.b16 %v421
    %v553 = vunpack.c.l.b16 %v422
    %v554 = vunpack.c.l.b16 %v423
    %v555 = vunpack.c.l.b16 %v424
    %v556 = vunpack.c.l.b16 %v425
    %v557 = vunpack.c.l.b16 %v426
    %v558 = vunpack.c.l.b16 %v427
    %v559 = vunpack.c.l.b16 %v428
    %v560 = vunpack.c.l.b16 %v429
    %v561 = vunpack.c.l.b16 %v430
    %v562 = vunpack.c.l.b16 %v431
    %v563 = vunpack.c.l.b16 %v432
    %v564 = vunpack.c.l.b16 %v433
    %v565 = vunpack.c.l.b16 %v434
    %v566 = vunpack.c.l.b16 %v435
    %v567 = vunpack.c.l.b16 %v436
    %v568 = vunpack.c.l.b16 %v437
    %v569 = vunpack.c.l.b16 %v438
    %v570 = vunpack.c.l.b16 %v439
    %v571 = vunpack.c.l.b16 %v440
    %v572 = vunpack.c.l.b16 %v441
    %v573 = vunpack.c.l.b16 %v442
    %v574 = vunpack.c.l.b16 %v443
    %v575 = vunpack.c.l.b16 %v444
    %v576 = vunpack.c.l.b16 %v445
    %v577 = vunpack.c.l.b16 %v446
    %v578 = vunpack.c.l.b16 %v447
    %v579 = vunpack.c.l.b16 %v448
    %v580 = vunpack.c.l.b16 %v449
    %v581 = vunpack.c.l.b16 %v450
    %v582 = vunpack.c.l.b16 %v451
    %v583 = vunpack.c.l.b16 %v452
    %v584 = vunpack.c.l.b16 %v453
    %v585 = vunpack.c.l.b16 %v454
    %v586 = vunpack.c.l.b16 %v455
    %v587 = vunpack.c.l.b16 %v456
    %v588 = vunpack.c.l.b16 %v457
    %v589 = vunpack.c.l.b16 %v458
    %v590 = vpack.c.b16 %v527, %v526
    %v591 = vpack.c.b16 %v529, %v528
    %v592 = vpack.c.b16 %v531, %v530
    %v593 = vpack.c.b16 %v533, %v532
    %v594 = vpack.c.b16 %v535, %v534
    %v595 = vpack.c.b16 %v537, %v536
    %v596 = vpack.c.b16 %v539, %v538
    %v597 = vpack.c.b16 %v541, %v540
    %v598 = vpack.c.b16 %v543, %v542
    %v599 = vpack.c.b16 %v545, %v544
    %v600 = vpack.c.b16 %v547, %v546
    %v601 = vpack.c.b16 %v549, %v548
    %v602 = vpack.c.b16 %v551, %v550
    %v603 = vpack.c.b16 %v553, %v552
    %v604 = vpack.c.b16 %v555, %v554
    %v605 = vpack.c.b16 %v557, %v556
    %v606 = vpack.c.b16 %v559, %v558
    %v607 = vpack.c.b16 %v561, %v560
    %v608 = vpack.c.b16 %v563, %v562
    %v609 = vpack.c.b16 %v565, %v564
    %v610 = vpack.c.b16 %v567, %v566
    %v611 = vpack.c.b16 %v569, %v568
    %v612 = vpack.c.b16 %v571, %v570
    %v613 = vpack.c.b16 %v573, %v572
    %v614 = vpack.c.b16 %v575, %v574
    %v615 = vpack.c.b16 %v577, %v576
    %v616 = vpack.c.b16 %v579, %v578
    %v617 = vpack.c.b16 %v581, %v580
    %v618 = vpack.c.b16 %v583, %v582
    %v619 = vpack.c.b16 %v585, %v584
    %v620 = vpack.c.b16 %v587, %v586
    %v621 = vpack.c.b16 %v589, %v588
    %654 = vmatpush.bf16.msra.mxu0 %v597
    %655 = vmatpush.bf16.msra.mxu0 %v596
    %656 = vmatpush.bf16.msra.mxu0 %v595
    %657 = vmatpush.bf16.msra.mxu0 %v594
    %658 = vmatpush.bf16.msra.mxu0 %v593
    %659 = vmatpush.bf16.msra.mxu0 %v592
    %660 = vmatpush.bf16.msra.mxu0 %v591
    %661 = vmatpush.bf16.msra.mxu0 %v590
    %662 = vmatmul.bf16.gmra.mxu0 %v387
    %v663 = vpop.f32.mrf.mxu0
    %v664 = vadd.f32 %v461, %v663
    %v665 = vpop.f32.mrf.mxu0
    %v666 = vadd.f32 %v461, %v665
    %667 = vmatmul.bf16.gmra.mxu0 %v391
    %v668 = vpop.f32.mrf.mxu0
    %v669 = vadd.f32 %v461, %v668
    %v670 = vpop.f32.mrf.mxu0
    %v671 = vadd.f32 %v461, %v670
    %672 = vdwg.mxu0
    %673 = vmatpush.bf16.msra.mxu0 %v605
    %674 = vmatpush.bf16.msra.mxu0 %v604
    %675 = vmatpush.bf16.msra.mxu0 %v603
    %676 = vmatpush.bf16.msra.mxu0 %v602
    %677 = vmatpush.bf16.msra.mxu0 %v601
    %678 = vmatpush.bf16.msra.mxu0 %v600
    %679 = vmatpush.bf16.msra.mxu0 %v599
    %680 = vmatpush.bf16.msra.mxu0 %v598
    %681 = vmatmul.bf16.gmra.mxu0 %v388
    %v682 = vpop.f32.mrf.mxu0
    %v683 = vadd.f32 %v664, %v682
    %v684 = vpop.f32.mrf.mxu0
    %v685 = vadd.f32 %v666, %v684
    %686 = vmatmul.bf16.gmra.mxu0 %v392
    %v687 = vpop.f32.mrf.mxu0
    %v688 = vadd.f32 %v669, %v687
    %v689 = vpop.f32.mrf.mxu0
    %v690 = vadd.f32 %v671, %v689
    %691 = vdwg.mxu0
    %692 = vmatpush.bf16.msra.mxu0 %v613
    %693 = vmatpush.bf16.msra.mxu0 %v612
    %694 = vmatpush.bf16.msra.mxu0 %v611
    %695 = vmatpush.bf16.msra.mxu0 %v610
    %696 = vmatpush.bf16.msra.mxu0 %v609
    %697 = vmatpush.bf16.msra.mxu0 %v608
    %698 = vmatpush.bf16.msra.mxu0 %v607
    %699 = vmatpush.bf16.msra.mxu0 %v606
    %700 = vmatmul.bf16.gmra.mxu0 %v389
    %v701 = vpop.f32.mrf.mxu0
    %v702 = vadd.f32 %v683, %v701
    %v703 = vpop.f32.mrf.mxu0
    %v704 = vadd.f32 %v685, %v703
    %705 = vmatmul.bf16.gmra.mxu0 %v393
    %v706 = vpop.f32.mrf.mxu0
    %v707 = vadd.f32 %v688, %v706
    %v708 = vpop.f32.mrf.mxu0
    %v709 = vadd.f32 %v690, %v708
    %710 = vdwg.mxu0
    %711 = vmatpush.bf16.msra.mxu0 %v621
    %712 = vmatpush.bf16.msra.mxu0 %v620
    %713 = vmatpush.bf16.msra.mxu0 %v619
    %714 = vmatpush.bf16.msra.mxu0 %v618
    %715 = vmatpush.bf16.msra.mxu0 %v617
    %716 = vmatpush.bf16.msra.mxu0 %v616
    %717 = vmatpush.bf16.msra.mxu0 %v615
    %718 = vmatpush.bf16.msra.mxu0 %v614
    %719 = vmatmul.bf16.gmra.mxu0 %v390
    %v720 = vpop.f32.mrf.mxu0
    %v721 = vadd.f32 %v702, %v720
    %v722 = vpop.f32.mrf.mxu0
    %v723 = vadd.f32 %v704, %v722
    %724 = vmatmul.bf16.gmra.mxu0 %v394
    %v725 = vpop.f32.mrf.mxu0
    %v726 = vadd.f32 %v707, %v725
    %v727 = vpop.f32.mrf.mxu0
    %v728 = vadd.f32 %v709, %v727
    %729 = vdwg.mxu0
    %730 = vst [vmem:[#allocation10] sm:$0xff] %v721
    %731 = vst [vmem:[#allocation10 + $0x8] sm:$0xff] %v723
    %732 = vst [vmem:[#allocation10 + $0x10] sm:$0xff] %v726
    %733 = vst [vmem:[#allocation10 + $0x18] sm:$0xff] %v728
    // Predicated region
    $region38: #{feed_forward.1} parent=1 // pred_check
      _
    $region39: #{feed_forward.1} parent=1 // pred_check_branch
      %735 = sbr.rel (0) target = $region41
    $region40: #{feed_forward.1} parent=1 // pred_region
      %737 = vsyncadd [#allocation4], 0
      %s738 = sshll.u32 [#allocation10], 4
      %s739 = int_to_ptr.vmem [resolvable:$true] %s738
      %s740 = sshll.u32 %s5, 4
      %s741 = int_to_ptr.hbm [resolvable:$true] %s740
      %746 = dma.vmem_to_hbm [thread:$0]  %s739, 512, %s741, [#allocation4], 128, 128, 8
    $region41: #{feed_forward.1} parent=1 // pred_fallthru
      _
    // Predicated region
    $region42: #{feed_forward.1} parent=1 // pred_check
      _
    $region43: #{feed_forward.1} parent=1 // pred_check_branch
      %748 = sbr.rel (0) target = $region45
    $region44: #{feed_forward.1} parent=1 // pred_region
      %750 = dma.done [#allocation4], 512
    $region45: #{feed_forward.1} parent=1 // pred_fallthru
      _
    %751 = vsyncpa [#allocation3], 1
    %752 = vsyncpa [#allocation6], 1
    %753 = vsyncpa [#allocation9], 1
    %754 = vsyncpa [#allocation4], 1

</llo_original>
